<compile_context>
chip_gen: v6e
topology: v6e:2x2x1
jax: 0.10.0
libtpu: 0.0.40
codegen_flags: <defaults>
</compile_context>

<pallas_src>
import jax
import jax.numpy as jnp
from jax.experimental import pallas as pl
from jax.experimental.pallas import tpu as pltpu


def _round_up(x, m):
    return ((x + m - 1) // m) * m


def _object_loss_kernel(kp_ref,    # (3, K, TB) template keypoints (x/y/z slabs)
                        R_ref,     # (3, 3, TB) rotation, batch on lanes
                        t_ref,     # (3, TB)    translation
                        gt_ref,    # (2, K, TB) gt 2-D keypoints
                        w_ref,     # (K, TB)    keypoint weights
                        f_ref,     # (1, TB)    focal length
                        num_ref,   # (1, TB)    per-lane weighted-L1 partial sum
                        den_ref):  # (1, TB)    per-lane weight partial sum (x2)
    x = kp_ref[0]                      # (K, TB)
    y = kp_ref[1]
    z = kp_ref[2]
    R = R_ref[...]                     # (3, 3, TB)
    t = t_ref[...]                     # (3, TB)
    w = w_ref[...]                     # (K, TB)
    f = f_ref[...]                     # (1, TB)

    # camera-frame points; the 3-length contraction is unrolled on the VPU
    pcx = R[0, 0:1] * x + R[0, 1:2] * y + R[0, 2:3] * z + t[0:1]   # (K, TB)
    pcy = R[1, 0:1] * x + R[1, 1:2] * y + R[1, 2:3] * z + t[1:2]
    pcz = R[2, 0:1] * x + R[2, 1:2] * y + R[2, 2:3] * z + t[2:3]

    # one reciprocal (EUP) + multiplies instead of two divides; fold focal in
    fz = f * pl.reciprocal(pcz, approx=False)                      # (K, TB)
    px = pcx * fz
    py = pcy * fz

    l1 = jnp.abs(px - gt_ref[0]) + jnp.abs(py - gt_ref[1])         # (K, TB)

    # reduce only over the keypoint (sublane) axis; lane reduce is done once
    # in the wrapper -> no carried accumulator across the grid.
    num_ref[...] = jnp.sum(l1 * w, axis=0, keepdims=True)          # (1, TB)
    den_ref[...] = 2.0 * jnp.sum(w, axis=0, keepdims=True)         # (1, TB)


def object_loss(object_keypoints, obj_R, obj_t, object_labels, gt_keypoints,
                keypoints_weights, focal_length, *, max_tb=512):
    """Pallas implementation of ObjectLoss.forward. Returns a scalar."""
    B, K, _ = gt_keypoints.shape
    f32 = jnp.float32

    labels = object_labels.astype(jnp.int32)
    # hoisted gather: the template table is only num_object*K*3 floats
    kp = jnp.take(object_keypoints.astype(f32), labels, axis=0)     # (B, K, 3)

    # lane-dense layout: batch on the lane (last, 128-wide) axis
    kp_t = jnp.transpose(kp, (2, 1, 0))                             # (3, K, B)
    gt_t = jnp.transpose(gt_keypoints.astype(f32), (2, 1, 0))       # (2, K, B)
    w_t = jnp.transpose(keypoints_weights.astype(f32), (1, 0))      # (K, B)
    R_t = jnp.transpose(obj_R.astype(f32), (1, 2, 0))               # (3, 3, B)
    t_t = jnp.transpose(obj_t.reshape(B, 3).astype(f32), (1, 0))    # (3, B)
    f_t = focal_length.reshape(1, B).astype(f32)                    # (1, B)

    # tile the batch (lane) axis; pad to a multiple of the tile width.
    # TB sized well under the 32 MiB scoped-VMEM default (valid on v7x too).
    TB = min(max_tb, _round_up(B, 128))
    Bp = _round_up(B, TB)
    pad = Bp - B
    if pad:
        kp_t = jnp.pad(kp_t, ((0, 0), (0, 0), (0, pad)))
        gt_t = jnp.pad(gt_t, ((0, 0), (0, 0), (0, pad)))
        w_t = jnp.pad(w_t, ((0, 0), (0, pad)))
        R_t = jnp.pad(R_t, ((0, 0), (0, 0), (0, pad)))
        f_t = jnp.pad(f_t, ((0, 0), (0, pad)))
        # padded columns get t_z = 1 so the projection stays finite; they
        # carry zero weight so they contribute nothing to num / den.
        t_pad = jnp.zeros((3, pad), f32).at[2, :].set(1.0)
        t_t = jnp.concatenate([t_t, t_pad], axis=1)

    grid_spec = pltpu.PrefetchScalarGridSpec(
        num_scalar_prefetch=0,
        grid=(Bp // TB,),
        in_specs=[
            pl.BlockSpec((3, K, TB), lambda i: (0, 0, i)),
            pl.BlockSpec((3, 3, TB), lambda i: (0, 0, i)),
            pl.BlockSpec((3, TB), lambda i: (0, i)),
            pl.BlockSpec((2, K, TB), lambda i: (0, 0, i)),
            pl.BlockSpec((K, TB), lambda i: (0, i)),
            pl.BlockSpec((1, TB), lambda i: (0, i)),
        ],
        out_specs=[
            pl.BlockSpec((1, TB), lambda i: (0, i)),
            pl.BlockSpec((1, TB), lambda i: (0, i)),
        ],
    )

    num, den = pl.pallas_call(
        _object_loss_kernel,
        grid_spec=grid_spec,
        out_shape=(jax.ShapeDtypeStruct((1, Bp), f32),
                   jax.ShapeDtypeStruct((1, Bp), f32)),
        compiler_params=pltpu.CompilerParams(
            dimension_semantics=("parallel",)),
    )(kp_t, R_t, t_t, gt_t, w_t, f_t)

    return jnp.sum(num) / jnp.sum(den)


def _reference(object_keypoints, obj_R, obj_t, object_labels, gt_keypoints,
               keypoints_weights, focal_length):
    """Pure-JAX reference mirroring the PyTorch forward."""
    kp = object_keypoints[object_labels]                               # (B, K, 3)
    pc = jnp.einsum('bij,bkj->bki', obj_R, kp) + obj_t[:, None, :]     # (B, K, 3)
    p2d = pc[..., :2] / pc[..., 2:3] * focal_length[:, None, None]     # (B, K, 2)
    l1 = jnp.abs(p2d - gt_keypoints)
    w2 = jnp.repeat(keypoints_weights[..., None], 2, axis=-1)
    return jnp.sum(l1 * w2) / jnp.sum(w2)


if __name__ == "__main__":
    key = jax.random.PRNGKey(0)
    B, num_object, K = 2, 4, 8
    k1, k2, k3, k4, k5, k6, k7 = jax.random.split(key, 7)

    # TODO(synk): the original module loads per-object keypoint templates from
    # dataset metadata on disk; here the buffer is synthesized deterministically.
    object_keypoints = jax.random.uniform(
        k1, (num_object, K, 3), jnp.float32, minval=-0.5, maxval=0.5)

    # proper-ish rotations via QR of random matrices
    obj_R, _ = jnp.linalg.qr(jax.random.normal(k2, (B, 3, 3), jnp.float32))
    obj_R = obj_R.astype(jnp.float32)

    obj_t = jnp.concatenate(
        [jax.random.uniform(k3, (B, 2), jnp.float32, minval=-0.2, maxval=0.2),
         jax.random.uniform(k4, (B, 1), jnp.float32, minval=2.5, maxval=3.5)],
        axis=-1)

    object_labels = jax.random.randint(k5, (B,), 0, num_object)
    gt_keypoints = jax.random.uniform(
        k6, (B, K, 2), jnp.float32, minval=-200.0, maxval=200.0)
    keypoints_weights = (jax.random.uniform(k7, (B, K)) > 0.3).astype(jnp.float32)
    focal_length = jnp.full((B,), 1000.0, jnp.float32)

    loss = object_loss(object_keypoints, obj_R, obj_t, object_labels,
                       gt_keypoints, keypoints_weights, focal_length)
    loss = jax.block_until_ready(loss)

    ref = _reference(object_keypoints, obj_R, obj_t, object_labels,
                     gt_keypoints, keypoints_weights, focal_length)
    assert jnp.allclose(loss, ref, rtol=1e-4, atol=1e-4), (loss, ref)
    print("KERNEL_OK")
</pallas_src>

<mosaic_0001>
module attributes {stable_mosaic.version = 11 : i64} {
  func.func @_object_loss_kernel(%arg0: i32, %arg1: memref<3x8x128xf32, #tpu.memory_space<vmem>>, %arg2: memref<3x3x128xf32, #tpu.memory_space<vmem>>, %arg3: memref<3x128xf32, #tpu.memory_space<vmem>>, %arg4: memref<2x8x128xf32, #tpu.memory_space<vmem>>, %arg5: memref<8x128xf32, #tpu.memory_space<vmem>>, %arg6: memref<1x128xf32, #tpu.memory_space<vmem>>, %arg7: memref<1x128xf32, #tpu.memory_space<vmem>>, %arg8: memref<1x128xf32, #tpu.memory_space<vmem>>) attributes {dimension_semantics = [#tpu.dimension_semantics<parallel>], iteration_bounds = array<i64: 1>, scalar_prefetch = 0 : i64, scratch_operands = 0 : i64, tpu.core_type = #tpu.core_type<tc>, window_params = [{transform_indices = @transform_0, window_bounds = array<i64: 3, 8, 128>}, {transform_indices = @transform_1, window_bounds = array<i64: 3, 3, 128>}, {transform_indices = @transform_2, window_bounds = array<i64: 3, 128>}, {transform_indices = @transform_3, window_bounds = array<i64: 2, 8, 128>}, {transform_indices = @transform_4, window_bounds = array<i64: 8, 128>}, {transform_indices = @transform_5, window_bounds = array<i64: 1, 128>}, {transform_indices = @transform_6, window_bounds = array<i64: 1, 128>}, {transform_indices = @transform_7, window_bounds = array<i64: 1, 128>}]} {
    %c0 = arith.constant 0 : index
    %c0_0 = arith.constant 0 : index
    %c0_1 = arith.constant 0 : index
    %0 = vector.load %arg1[%c0, %c0_0, %c0_1] : memref<3x8x128xf32, #tpu.memory_space<vmem>>, vector<1x8x128xf32>
    %1 = vector.shape_cast %0 : vector<1x8x128xf32> to vector<8x128xf32>
    %c1 = arith.constant 1 : index
    %c0_2 = arith.constant 0 : index
    %c0_3 = arith.constant 0 : index
    %2 = vector.load %arg1[%c1, %c0_2, %c0_3] : memref<3x8x128xf32, #tpu.memory_space<vmem>>, vector<1x8x128xf32>
    %3 = vector.shape_cast %2 : vector<1x8x128xf32> to vector<8x128xf32>
    %c2 = arith.constant 2 : index
    %c0_4 = arith.constant 0 : index
    %c0_5 = arith.constant 0 : index
    %4 = vector.load %arg1[%c2, %c0_4, %c0_5] : memref<3x8x128xf32, #tpu.memory_space<vmem>>, vector<1x8x128xf32>
    %5 = vector.shape_cast %4 : vector<1x8x128xf32> to vector<8x128xf32>
    %c0_6 = arith.constant 0 : index
    %c0_7 = arith.constant 0 : index
    %c0_8 = arith.constant 0 : index
    %6 = vector.load %arg2[%c0_6, %c0_7, %c0_8] : memref<3x3x128xf32, #tpu.memory_space<vmem>>, vector<3x3x128xf32>
    %c0_9 = arith.constant 0 : index
    %c0_10 = arith.constant 0 : index
    %7 = vector.load %arg3[%c0_9, %c0_10] : memref<3x128xf32, #tpu.memory_space<vmem>>, vector<3x128xf32>
    %c0_11 = arith.constant 0 : index
    %c0_12 = arith.constant 0 : index
    %8 = vector.load %arg5[%c0_11, %c0_12] : memref<8x128xf32, #tpu.memory_space<vmem>>, vector<8x128xf32>
    %c0_13 = arith.constant 0 : index
    %c0_14 = arith.constant 0 : index
    %9 = vector.load %arg6[%c0_13, %c0_14] : memref<1x128xf32, #tpu.memory_space<vmem>>, vector<1x128xf32>
    %10 = vector.extract_strided_slice %6 {offsets = [0, 0, 0], sizes = [1, 1, 128], strides = [1, 1, 1]} : vector<3x3x128xf32> to vector<1x1x128xf32>
    %11 = vector.shape_cast %10 : vector<1x1x128xf32> to vector<1x128xf32>
    %12 = vector.broadcast %11 : vector<1x128xf32> to vector<8x128xf32>
    %13 = arith.mulf %12, %1 : vector<8x128xf32>
    %14 = vector.extract_strided_slice %6 {offsets = [0, 1, 0], sizes = [1, 1, 128], strides = [1, 1, 1]} : vector<3x3x128xf32> to vector<1x1x128xf32>
    %15 = vector.shape_cast %14 : vector<1x1x128xf32> to vector<1x128xf32>
    %16 = vector.broadcast %15 : vector<1x128xf32> to vector<8x128xf32>
    %17 = arith.mulf %16, %3 : vector<8x128xf32>
    %18 = arith.addf %13, %17 : vector<8x128xf32>
    %19 = vector.extract_strided_slice %6 {offsets = [0, 2, 0], sizes = [1, 1, 128], strides = [1, 1, 1]} : vector<3x3x128xf32> to vector<1x1x128xf32>
    %20 = vector.shape_cast %19 : vector<1x1x128xf32> to vector<1x128xf32>
    %21 = vector.broadcast %20 : vector<1x128xf32> to vector<8x128xf32>
    %22 = arith.mulf %21, %5 : vector<8x128xf32>
    %23 = arith.addf %18, %22 : vector<8x128xf32>
    %24 = vector.extract_strided_slice %7 {offsets = [0, 0], sizes = [1, 128], strides = [1, 1]} : vector<3x128xf32> to vector<1x128xf32>
    %25 = vector.broadcast %24 : vector<1x128xf32> to vector<8x128xf32>
    %26 = arith.addf %23, %25 : vector<8x128xf32>
    %27 = vector.extract_strided_slice %6 {offsets = [1, 0, 0], sizes = [1, 1, 128], strides = [1, 1, 1]} : vector<3x3x128xf32> to vector<1x1x128xf32>
    %28 = vector.shape_cast %27 : vector<1x1x128xf32> to vector<1x128xf32>
    %29 = vector.broadcast %28 : vector<1x128xf32> to vector<8x128xf32>
    %30 = arith.mulf %29, %1 : vector<8x128xf32>
    %31 = vector.extract_strided_slice %6 {offsets = [1, 1, 0], sizes = [1, 1, 128], strides = [1, 1, 1]} : vector<3x3x128xf32> to vector<1x1x128xf32>
    %32 = vector.shape_cast %31 : vector<1x1x128xf32> to vector<1x128xf32>
    %33 = vector.broadcast %32 : vector<1x128xf32> to vector<8x128xf32>
    %34 = arith.mulf %33, %3 : vector<8x128xf32>
    %35 = arith.addf %30, %34 : vector<8x128xf32>
    %36 = vector.extract_strided_slice %6 {offsets = [1, 2, 0], sizes = [1, 1, 128], strides = [1, 1, 1]} : vector<3x3x128xf32> to vector<1x1x128xf32>
    %37 = vector.shape_cast %36 : vector<1x1x128xf32> to vector<1x128xf32>
    %38 = vector.broadcast %37 : vector<1x128xf32> to vector<8x128xf32>
    %39 = arith.mulf %38, %5 : vector<8x128xf32>
    %40 = arith.addf %35, %39 : vector<8x128xf32>
    %41 = vector.extract_strided_slice %7 {offsets = [1, 0], sizes = [1, 128], strides = [1, 1]} : vector<3x128xf32> to vector<1x128xf32>
    %42 = vector.broadcast %41 : vector<1x128xf32> to vector<8x128xf32>
    %43 = arith.addf %40, %42 : vector<8x128xf32>
    %44 = vector.extract_strided_slice %6 {offsets = [2, 0, 0], sizes = [1, 1, 128], strides = [1, 1, 1]} : vector<3x3x128xf32> to vector<1x1x128xf32>
    %45 = vector.shape_cast %44 : vector<1x1x128xf32> to vector<1x128xf32>
    %46 = vector.broadcast %45 : vector<1x128xf32> to vector<8x128xf32>
    %47 = arith.mulf %46, %1 : vector<8x128xf32>
    %48 = vector.extract_strided_slice %6 {offsets = [2, 1, 0], sizes = [1, 1, 128], strides = [1, 1, 1]} : vector<3x3x128xf32> to vector<1x1x128xf32>
    %49 = vector.shape_cast %48 : vector<1x1x128xf32> to vector<1x128xf32>
    %50 = vector.broadcast %49 : vector<1x128xf32> to vector<8x128xf32>
    %51 = arith.mulf %50, %3 : vector<8x128xf32>
    %52 = arith.addf %47, %51 : vector<8x128xf32>
    %53 = vector.extract_strided_slice %6 {offsets = [2, 2, 0], sizes = [1, 1, 128], strides = [1, 1, 1]} : vector<3x3x128xf32> to vector<1x1x128xf32>
    %54 = vector.shape_cast %53 : vector<1x1x128xf32> to vector<1x128xf32>
    %55 = vector.broadcast %54 : vector<1x128xf32> to vector<8x128xf32>
    %56 = arith.mulf %55, %5 : vector<8x128xf32>
    %57 = arith.addf %52, %56 : vector<8x128xf32>
    %58 = vector.extract_strided_slice %7 {offsets = [2, 0], sizes = [1, 128], strides = [1, 1]} : vector<3x128xf32> to vector<1x128xf32>
    %59 = vector.broadcast %58 : vector<1x128xf32> to vector<8x128xf32>
    %60 = arith.addf %57, %59 : vector<8x128xf32>
    %61 = tpu.reciprocal %60 : vector<8x128xf32> -> vector<8x128xf32>
    %62 = vector.broadcast %9 : vector<1x128xf32> to vector<8x128xf32>
    %63 = arith.mulf %62, %61 : vector<8x128xf32>
    %64 = arith.mulf %26, %63 : vector<8x128xf32>
    %65 = arith.mulf %43, %63 : vector<8x128xf32>
    %c0_15 = arith.constant 0 : index
    %c0_16 = arith.constant 0 : index
    %c0_17 = arith.constant 0 : index
    %66 = vector.load %arg4[%c0_15, %c0_16, %c0_17] : memref<2x8x128xf32, #tpu.memory_space<vmem>>, vector<1x8x128xf32>
    %67 = vector.shape_cast %66 : vector<1x8x128xf32> to vector<8x128xf32>
    %68 = arith.subf %64, %67 : vector<8x128xf32>
    %69 = math.absf %68 : vector<8x128xf32>
    %c1_18 = arith.constant 1 : index
    %c0_19 = arith.constant 0 : index
    %c0_20 = arith.constant 0 : index
    %70 = vector.load %arg4[%c1_18, %c0_19, %c0_20] : memref<2x8x128xf32, #tpu.memory_space<vmem>>, vector<1x8x128xf32>
    %71 = vector.shape_cast %70 : vector<1x8x128xf32> to vector<8x128xf32>
    %72 = arith.subf %65, %71 : vector<8x128xf32>
    %73 = math.absf %72 : vector<8x128xf32>
    %74 = arith.addf %69, %73 : vector<8x128xf32>
    %75 = arith.mulf %74, %8 : vector<8x128xf32>
    %cst = arith.constant dense<0.000000e+00> : vector<128xf32>
    %76 = vector.multi_reduction <add>, %75, %cst [0] : vector<8x128xf32> to vector<128xf32>
    %77 = vector.shape_cast %76 : vector<128xf32> to vector<1x128xf32>
    %c0_21 = arith.constant 0 : index
    %c0_22 = arith.constant 0 : index
    %78 = vector.load %arg7[%c0_21, %c0_22] : memref<1x128xf32, #tpu.memory_space<vmem>>, vector<1x128xf32>
    tpu.vector_store %arg7[%c0_21, %c0_22], %77 {strides = array<i32>} : memref<1x128xf32, #tpu.memory_space<vmem>>, vector<1x128xf32>,
    %cst_23 = arith.constant dense<0.000000e+00> : vector<128xf32>
    %79 = vector.multi_reduction <add>, %8, %cst_23 [0] : vector<8x128xf32> to vector<128xf32>
    %80 = vector.shape_cast %79 : vector<128xf32> to vector<1x128xf32>
    %cst_24 = arith.constant 2.000000e+00 : f32
    %81 = vector.broadcast %cst_24 : f32 to vector<1x128xf32>
    %82 = arith.mulf %81, %80 : vector<1x128xf32>
    %c0_25 = arith.constant 0 : index
    %c0_26 = arith.constant 0 : index
    %83 = vector.load %arg8[%c0_25, %c0_26] : memref<1x128xf32, #tpu.memory_space<vmem>>, vector<1x128xf32>
    tpu.vector_store %arg8[%c0_25, %c0_26], %82 {strides = array<i32>} : memref<1x128xf32, #tpu.memory_space<vmem>>, vector<1x128xf32>,
    return
  }
  func.func @transform_0(%arg0: i32) -> (i32, i32, i32) {
    %c0_i32 = arith.constant 0 : i32
    %c0_i32_0 = arith.constant 0 : i32
    %c0_i32_1 = arith.constant 0 : i32
    return %c0_i32, %c0_i32_0, %arg0 : i32, i32, i32
  }
  func.func @transform_1(%arg0: i32) -> (i32, i32, i32) {
    %c0_i32 = arith.constant 0 : i32
    %c0_i32_0 = arith.constant 0 : i32
    %c0_i32_1 = arith.constant 0 : i32
    return %c0_i32, %c0_i32_0, %arg0 : i32, i32, i32
  }
  func.func @transform_2(%arg0: i32) -> (i32, i32) {
    %c0_i32 = arith.constant 0 : i32
    %c0_i32_0 = arith.constant 0 : i32
    return %c0_i32, %arg0 : i32, i32
  }
  func.func @transform_3(%arg0: i32) -> (i32, i32, i32) {
    %c0_i32 = arith.constant 0 : i32
    %c0_i32_0 = arith.constant 0 : i32
    %c0_i32_1 = arith.constant 0 : i32
    return %c0_i32, %c0_i32_0, %arg0 : i32, i32, i32
  }
  func.func @transform_4(%arg0: i32) -> (i32, i32) {
    %c0_i32 = arith.constant 0 : i32
    %c0_i32_0 = arith.constant 0 : i32
    return %c0_i32, %arg0 : i32, i32
  }
  func.func @transform_5(%arg0: i32) -> (i32, i32) {
    %c0_i32 = arith.constant 0 : i32
    %c0_i32_0 = arith.constant 0 : i32
    return %c0_i32, %arg0 : i32, i32
  }
  func.func @transform_6(%arg0: i32) -> (i32, i32) {
    %c0_i32 = arith.constant 0 : i32
    %c0_i32_0 = arith.constant 0 : i32
    return %c0_i32, %arg0 : i32, i32
  }
  func.func @transform_7(%arg0: i32) -> (i32, i32) {
    %c0_i32 = arith.constant 0 : i32
    %c0_i32_0 = arith.constant 0 : i32
    return %c0_i32, %arg0 : i32, i32
  }
}

</mosaic_0001>

<llo_original>
// kernel: tpu_custom_call.1
$region0: #{tpu_custom_call.1}
  #allocation0 [shape = 'u32[]', space=smem, size = 0x4, offset = 0x4, fixed_abs, tag = 'smem constant byte address 0x4 - core index']
  #allocation1 [shape = 'u32[144,128]{1,0:T(1,128)}', space=vmem, size = 0x12000, scoped, tag = 'internal scratch']
  %s0 = inlined_call_operand.hbm [shape: f32[3,8,128], index: 0, kind: input, shape index: {}]
  %s1 = inlined_call_operand.hbm [shape: f32[3,3,128], index: 1, kind: input, shape index: {}]
  %s2 = inlined_call_operand.hbm [shape: f32[3,128], index: 2, kind: input, shape index: {}]
  %s3 = inlined_call_operand.hbm [shape: f32[2,8,128], index: 3, kind: input, shape index: {}]
  %s4 = inlined_call_operand.hbm [shape: f32[8,128], index: 4, kind: input, shape index: {}]
  %s5 = inlined_call_operand.vmem [shape: f32[1,128], index: 5, kind: input, shape index: {}]
  %s6 = inlined_call_operand.hbm [shape: f32[1,128], index: 6, kind: output, shape index: {0}]
  %s7 = inlined_call_operand.hbm [shape: f32[1,128], index: 7, kind: output, shape index: {1}]
  %8 = xla_tuple %s6, %s7
  %s9 = sld [smem:[#allocation0]]
  $region62: #{tpu_custom_call.1} parent=0
    _
  %s11 = ssub.s32 1, %s9
  %s12 = scalar_select 0, %s11, %s9
  $region1: #{tpu_custom_call.1} parent=0
    #allocation2 [shape = 'u8[12288]{0}', space=vmem, size = 0x3000, scoped, tag = 'input window, operand 0, single buffered']
    #allocation3 [shape = 's32[1]{0}', space=sflag, size = 0x4, scoped, tag = 'scoped memory for tpu_custom_call.1']
    #allocation4 [shape = 's32[1]{0}', space=sflag, size = 0x4, scoped, tag = 'scoped memory for tpu_custom_call.1']
    #allocation5 [shape = 'u8[6144]{0}', space=vmem, size = 0x1800, scoped, tag = 'input window, operand 1, single buffered']
    #allocation6 [shape = 's32[1]{0}', space=sflag, size = 0x4, scoped, tag = 'scoped memory for tpu_custom_call.1']
    #allocation7 [shape = 'u8[2048]{0}', space=vmem, size = 0x800, scoped, tag = 'input window, operand 2, single buffered']
    #allocation8 [shape = 'u8[8192]{0}', space=vmem, size = 0x2000, scoped, tag = 'input window, operand 3, single buffered']
    #allocation9 [shape = 's32[1]{0}', space=sflag, size = 0x4, scoped, tag = 'scoped memory for tpu_custom_call.1']
    #allocation10 [shape = 'u8[4096]{0}', space=vmem, size = 0x1000, scoped, tag = 'input window, operand 4, single buffered']
    #allocation11 [shape = 'u8[512]{0}', space=vmem, size = 0x400, scoped, tag = 'output window, operand 0, single buffered']
    #allocation12 [shape = 'u8[512]{0}', space=vmem, size = 0x400, scoped, tag = 'output window, operand 1, single buffered']
    #allocation13 [shape = 's32[1]{0}', space=sflag, size = 0x4, scoped, tag = 'scoped memory for tpu_custom_call.1']
    %13 = vsyncpa [#allocation3], 0
    %14 = vsyncpa [#allocation6], 0
    %15 = vsyncpa [#allocation9], 0
    %16 = vsyncpa [#allocation4], 0
    %17 = vsyncpa [#allocation13], 0
    // Predicated region
    $region2: #{tpu_custom_call.1} parent=1 // pred_check
      _
    $region3: #{tpu_custom_call.1} parent=1 // pred_check_branch
      %19 = sbr.rel (0) target = $region5
    $region4: #{tpu_custom_call.1} parent=1 // pred_region
      %s21 = ssub.s32 384, 384
      %22 = vsyncadd [#allocation3], %s21
      %s23 = sshll.u32 [#allocation2], 4
      %s24 = int_to_ptr.vmem [resolvable:$true] %s23
      %29 = dma.hbm_to_vmem [thread:$0]  %s0, 384, %s24, [#allocation3], 128, 128, 8
    $region5: #{tpu_custom_call.1} parent=1 // pred_fallthru
      _
    // Predicated region
    $region6: #{tpu_custom_call.1} parent=1 // pred_check
      _
    $region7: #{tpu_custom_call.1} parent=1 // pred_check_branch
      %31 = sbr.rel (0) target = $region9
    $region8: #{tpu_custom_call.1} parent=1 // pred_region
      %s33 = ssub.s32 192, 192
      %34 = vsyncadd [#allocation6], %s33
      %s35 = sshll.u32 [#allocation5], 4
      %s36 = int_to_ptr.vmem [resolvable:$true] %s35
      %41 = dma.hbm_to_vmem [thread:$0]  %s1, 192, %s36, [#allocation6], 64, 64, 4
    $region9: #{tpu_custom_call.1} parent=1 // pred_fallthru
      _
    // Predicated region
    $region10: #{tpu_custom_call.1} parent=1 // pred_check
      _
    $region11: #{tpu_custom_call.1} parent=1 // pred_check_branch
      %43 = sbr.rel (0) target = $region13
    $region12: #{tpu_custom_call.1} parent=1 // pred_region
      %s45 = ssub.s32 64, 64
      %46 = vsyncadd [#allocation6], %s45
      %s48 = sshll.u32 [#allocation7], 4
      %s49 = int_to_ptr.vmem [resolvable:$true] %s48
      %51 = dma.hbm_to_vmem [thread:$0]  %s2, 64, %s49, [#allocation6]
    $region13: #{tpu_custom_call.1} parent=1 // pred_fallthru
      _
    // Predicated region
    $region14: #{tpu_custom_call.1} parent=1 // pred_check
      _
    $region15: #{tpu_custom_call.1} parent=1 // pred_check_branch
      %53 = sbr.rel (0) target = $region17
    $region16: #{tpu_custom_call.1} parent=1 // pred_region
      %s55 = ssub.s32 256, 256
      %56 = vsyncadd [#allocation9], %s55
      %s57 = sshll.u32 [#allocation8], 4
      %s58 = int_to_ptr.vmem [resolvable:$true] %s57
      %63 = dma.hbm_to_vmem [thread:$0]  %s3, 256, %s58, [#allocation9], 128, 128, 8
    $region17: #{tpu_custom_call.1} parent=1 // pred_fallthru
      _
    // Predicated region
    $region18: #{tpu_custom_call.1} parent=1 // pred_check
      _
    $region19: #{tpu_custom_call.1} parent=1 // pred_check_branch
      %65 = sbr.rel (0) target = $region21
    $region20: #{tpu_custom_call.1} parent=1 // pred_region
      %s67 = ssub.s32 128, 128
      %68 = vsyncadd [#allocation9], %s67
      %s70 = sshll.u32 [#allocation10], 4
      %s71 = int_to_ptr.vmem [resolvable:$true] %s70
      %73 = dma.hbm_to_vmem [thread:$0]  %s4, 128, %s71, [#allocation9]
    $region21: #{tpu_custom_call.1} parent=1 // pred_fallthru
      _
    // Predicated region
    $region22: #{tpu_custom_call.1} parent=1 // pred_check
      _
    $region23: #{tpu_custom_call.1} parent=1 // pred_check_branch
      %75 = sbr.rel (0) target = $region25
    $region24: #{tpu_custom_call.1} parent=1 // pred_region
      _
    $region25: #{tpu_custom_call.1} parent=1 // pred_fallthru
      _
    // Predicated region
    $region26: #{tpu_custom_call.1} parent=1 // pred_check
      _
    $region27: #{tpu_custom_call.1} parent=1 // pred_check_branch
      %77 = sbr.rel (0) target = $region29
    $region28: #{tpu_custom_call.1} parent=1 // pred_region
      %78 = dma.done [#allocation3], 384
    $region29: #{tpu_custom_call.1} parent=1 // pred_fallthru
      _
    // Predicated region
    $region30: #{tpu_custom_call.1} parent=1 // pred_check
      _
    $region31: #{tpu_custom_call.1} parent=1 // pred_check_branch
      %80 = sbr.rel (0) target = $region33
    $region32: #{tpu_custom_call.1} parent=1 // pred_region
      %81 = dma.done [#allocation6], 192
    $region33: #{tpu_custom_call.1} parent=1 // pred_fallthru
      _
    // Predicated region
    $region34: #{tpu_custom_call.1} parent=1 // pred_check
      _
    $region35: #{tpu_custom_call.1} parent=1 // pred_check_branch
      %83 = sbr.rel (0) target = $region37
    $region36: #{tpu_custom_call.1} parent=1 // pred_region
      %84 = dma.done [#allocation6], 64
    $region37: #{tpu_custom_call.1} parent=1 // pred_fallthru
      _
    // Predicated region
    $region38: #{tpu_custom_call.1} parent=1 // pred_check
      _
    $region39: #{tpu_custom_call.1} parent=1 // pred_check_branch
      %86 = sbr.rel (0) target = $region41
    $region40: #{tpu_custom_call.1} parent=1 // pred_region
      %87 = dma.done [#allocation9], 256
    $region41: #{tpu_custom_call.1} parent=1 // pred_fallthru
      _
    // Predicated region
    $region42: #{tpu_custom_call.1} parent=1 // pred_check
      _
    $region43: #{tpu_custom_call.1} parent=1 // pred_check_branch
      %89 = sbr.rel (0) target = $region45
    $region44: #{tpu_custom_call.1} parent=1 // pred_region
      %90 = dma.done [#allocation9], 128
    $region45: #{tpu_custom_call.1} parent=1 // pred_fallthru
      _
    %v91 = vld [vmem:[#allocation2] sm:$0xff]
    %s92 = scalar_lea.vmem [#allocation2], 8
    %v93 = vld [vmem:[%s92] sm:$0xff]
    %s94 = scalar_lea.vmem [#allocation2], 16
    %v95 = vld [vmem:[%s94] sm:$0xff]
    %v96 = vld [vmem:[#allocation5] sm:$0x7]
    %v97 = vld [vmem:[#allocation5 + $0x4] sm:$0x7]
    %v98 = vld [vmem:[#allocation5 + $0x8] sm:$0x7]
    %v99 = vld [vmem:[#allocation7] sm:$0x7]
    %v100 = vld [vmem:[#allocation10] sm:$0xff]
    %v101 = vld [vmem:[%s5] sm:$0x1]
    %v102 = vlaneseq
    %v103 = vshrl.u32 %v102, 7
    %v104 = vsub.s32 0, %v103
    %v105 = vrot.slane %v96, %v104
    %v106 = vmul.f32 %v105, %v91
    %v107 = vlaneseq
    %v108 = vshrl.u32 %v107, 7
    %v109 = vsub.s32 1, %v108
    %v110 = vrot.slane %v96, %v109
    %v111 = vmul.f32 %v110, %v93
    %v112 = vadd.f32 %v106, %v111
    %v113 = vlaneseq
    %v114 = vshrl.u32 %v113, 7
    %v115 = vsub.s32 2, %v114
    %v116 = vrot.slane %v96, %v115
    %v117 = vmul.f32 %v116, %v95
    %v118 = vadd.f32 %v112, %v117
    %v119 = vlaneseq
    %v120 = vshrl.u32 %v119, 7
    %v121 = vsub.s32 0, %v120
    %v122 = vrot.slane %v99, %v121
    %v123 = vadd.f32 %v118, %v122
    %v124 = vlaneseq
    %v125 = vshrl.u32 %v124, 7
    %v126 = vsub.s32 0, %v125
    %v127 = vrot.slane %v97, %v126
    %v128 = vmul.f32 %v127, %v91
    %v129 = vlaneseq
    %v130 = vshrl.u32 %v129, 7
    %v131 = vsub.s32 1, %v130
    %v132 = vrot.slane %v97, %v131
    %v133 = vmul.f32 %v132, %v93
    %v134 = vadd.f32 %v128, %v133
    %v135 = vlaneseq
    %v136 = vshrl.u32 %v135, 7
    %v137 = vsub.s32 2, %v136
    %v138 = vrot.slane %v97, %v137
    %v139 = vmul.f32 %v138, %v95
    %v140 = vadd.f32 %v134, %v139
    %v141 = vlaneseq
    %v142 = vshrl.u32 %v141, 7
    %v143 = vsub.s32 1, %v142
    %v144 = vrot.slane %v99, %v143
    %v145 = vadd.f32 %v140, %v144
    %v146 = vlaneseq
    %v147 = vshrl.u32 %v146, 7
    %v148 = vsub.s32 0, %v147
    %v149 = vrot.slane %v98, %v148
    %v150 = vmul.f32 %v149, %v91
    %v151 = vlaneseq
    %v152 = vshrl.u32 %v151, 7
    %v153 = vsub.s32 1, %v152
    %v154 = vrot.slane %v98, %v153
    %v155 = vmul.f32 %v154, %v93
    %v156 = vadd.f32 %v150, %v155
    %v157 = vlaneseq
    %v158 = vshrl.u32 %v157, 7
    %v159 = vsub.s32 2, %v158
    %v160 = vrot.slane %v98, %v159
    %v161 = vmul.f32 %v160, %v95
    %v162 = vadd.f32 %v156, %v161
    %v163 = vlaneseq
    %v164 = vshrl.u32 %v163, 7
    %v165 = vsub.s32 2, %v164
    %v166 = vrot.slane %v99, %v165
    %v167 = vadd.f32 %v162, %v166
    %v168 = vrcp.pop %v167
    %v170 = vlaneseq
    %v171 = vshrl.u32 %v170, 7
    %v172 = vsub.s32 0, %v171
    %v173 = vrot.slane %v101, %v172
    %v175 = vmul.f32 %v173, %v168
    %v176 = vmul.f32 %v123, %v175
    %v177 = vmul.f32 %v145, %v175
    %v178 = vld [vmem:[#allocation8] sm:$0xff]
    %v179 = vsub.f32 %v176, %v178
    %v180 = vand.u32 2147483647, %v179
    %s181 = scalar_lea.vmem [#allocation8], 8
    %v182 = vld [vmem:[%s181] sm:$0xff]
    %v183 = vsub.f32 %v177, %v182
    %v184 = vand.u32 2147483647, %v183
    %v185 = vadd.f32 %v180, %v184
    %v186 = vmul.f32 %v185, %v100
    %v187 = vrot.slane %v186, 4
    %v188 = vadd.f32 %v186, %v187
    %v189 = vrot.slane %v188, 2
    %v190 = vadd.f32 %v188, %v189
    %v191 = vrot.slane %v190, 1
    %v192 = vadd.f32 %v190, %v191
    %193 = vst [vmem:[#allocation11] sm:$0x1] %v192
    %v194 = vrot.slane %v100, 4
    %v195 = vadd.f32 %v100, %v194
    %v196 = vrot.slane %v195, 2
    %v197 = vadd.f32 %v195, %v196
    %v198 = vrot.slane %v197, 1
    %v199 = vadd.f32 %v197, %v198
    %v200 = vmul.f32 %v199, 2.0
    %201 = vst [vmem:[#allocation12] sm:$0x1] %v200
    // Predicated region
    $region46: #{tpu_custom_call.1} parent=1 // pred_check
      _
    $region47: #{tpu_custom_call.1} parent=1 // pred_check_branch
      %203 = sbr.rel (0) target = $region49
    $region48: #{tpu_custom_call.1} parent=1 // pred_region
      %s205 = ssub.s32 16, 16
      %206 = vsyncadd [#allocation4], %s205
      %s208 = sshll.u32 [#allocation11], 4
      %s209 = int_to_ptr.vmem [resolvable:$true] %s208
      %211 = dma.vmem_to_hbm [thread:$0]  %s209, 16, %s6, [#allocation4]
    $region49: #{tpu_custom_call.1} parent=1 // pred_fallthru
      _
    // Predicated region
    $region50: #{tpu_custom_call.1} parent=1 // pred_check
      _
    $region51: #{tpu_custom_call.1} parent=1 // pred_check_branch
      %213 = sbr.rel (0) target = $region53
    $region52: #{tpu_custom_call.1} parent=1 // pred_region
      %s215 = ssub.s32 16, 16
      %216 = vsyncadd [#allocation13], %s215
      %s218 = sshll.u32 [#allocation12], 4
      %s219 = int_to_ptr.vmem [resolvable:$true] %s218
      %221 = dma.vmem_to_hbm [thread:$0]  %s219, 16, %s7, [#allocation13]
    $region53: #{tpu_custom_call.1} parent=1 // pred_fallthru
      _
    // Predicated region
    $region54: #{tpu_custom_call.1} parent=1 // pred_check
      _
    $region55: #{tpu_custom_call.1} parent=1 // pred_check_branch
      %223 = sbr.rel (0) target = $region57
    $region56: #{tpu_custom_call.1} parent=1 // pred_region
      %224 = dma.done [#allocation4], 16
    $region57: #{tpu_custom_call.1} parent=1 // pred_fallthru
      _
    // Predicated region
    $region58: #{tpu_custom_call.1} parent=1 // pred_check
      _
    $region59: #{tpu_custom_call.1} parent=1 // pred_check_branch
      %226 = sbr.rel (0) target = $region61
    $region60: #{tpu_custom_call.1} parent=1 // pred_region
      %227 = dma.done [#allocation13], 16
    $region61: #{tpu_custom_call.1} parent=1 // pred_fallthru
      _
    %228 = vsyncpa [#allocation3], 1
    %229 = vsyncpa [#allocation6], 1
    %230 = vsyncpa [#allocation9], 1
    %231 = vsyncpa [#allocation4], 1
    %232 = vsyncpa [#allocation13], 1

</llo_original>
